<compile_context>
chip_gen: v7x
topology: tpu7x:2x2x1
jax: 0.10.0
libtpu: 0.0.40
codegen_flags: <defaults>
</compile_context>

<pallas_src>
import functools

import jax
import jax.numpy as jnp
import numpy as np
from jax.experimental import pallas as pl
from jax.experimental.pallas import tpu as pltpu


def _cond_entropy_kernel(x_ref, o_ref, acc_ref, *, batch, tile_b, tiles_per_split):
    s = pl.program_id(0)          # parallel split (megacore / v7x dual-TC)
    t = pl.program_id(1)          # batch-tile reduction step

    @pl.when(t == 0)
    def _():
        acc_ref[...] = jnp.zeros_like(acc_ref)

    x = x_ref[...].astype(jnp.float32)                  # (TB, C), f32 compute

    # Numerically-stable softmax pieces along the class (lane) axis.
    m = jnp.max(x, axis=1, keepdims=True)               # (TB, 1)  XLU
    z = x - m                                           # (TB, C)  VPU
    e = jnp.exp(z)                                      # (TB, C)  EUP
    ssum = jnp.sum(e, axis=1, keepdims=True)            # (TB, 1)  XLU
    r = jnp.sum(e * z, axis=1, keepdims=True)           # (TB, 1)  XLU
    # sum_c softmax*log_softmax = r/ssum - log(ssum)    (uses sum_c softmax = 1)
    ent = r / ssum - jnp.log(ssum)                      # (TB, 1)

    # Mask rows outside the real batch (partial last tile / clamped duplicate
    # tiles produced by the 2-way split over-coverage).
    lt = s * tiles_per_split + t                        # logical tile index
    row = lt * tile_b + jax.lax.broadcasted_iota(jnp.int32, ent.shape, 0)
    ent = jnp.where(row < batch, ent, 0.0)

    acc_ref[...] += jnp.sum(ent, axis=0, keepdims=True)  # (1, 1) partial sum

    @pl.when(t == tiles_per_split - 1)
    def _():
        # Broadcast the partial into this split's (8, 128) output tile; the
        # wrapper reads element [0, 0] of each split's tile.
        o_ref[...] = jnp.broadcast_to(acc_ref[...], o_ref.shape)


def _choose_tile_b(batch, n_classes, itemsize):
    if batch <= 8:
        return batch
    # ~8 MiB per input buffer -> 16 MiB double-buffered: comfortably inside the
    # 32 MiB scoped VMEM default on all generations (including v7x).
    budget_bytes = 8 * 1024 * 1024
    max_rows = max(8, budget_bytes // max(1, n_classes * itemsize))
    tb = min(batch, max_rows, 1024)
    return max(8, (tb // 8) * 8)


def conditional_entropy_loss(x, *, tile_b=None):
    """x: (B, C) float logits (f32 or bf16) -> scalar f32 loss."""
    batch, n_classes = x.shape
    if tile_b is None:
        tile_b = _choose_tile_b(batch, n_classes, jnp.dtype(x.dtype).itemsize)
    tile_b = min(tile_b, batch)

    tiles_total = pl.cdiv(batch, tile_b)
    num_splits = 2 if tiles_total >= 2 else 1            # use both TCs on v7x
    tiles_per_split = pl.cdiv(tiles_total, num_splits)

    kernel = functools.partial(
        _cond_entropy_kernel,
        batch=batch, tile_b=tile_b, tiles_per_split=tiles_per_split)

    def x_index_map(s, t):
        # Clamp so an over-covering grid never issues an OOB block index; the
        # clamped (duplicate) tiles are fully masked inside the kernel.
        return (jnp.minimum(s * tiles_per_split + t, tiles_total - 1), 0)

    partials = pl.pallas_call(
        kernel,
        out_shape=jax.ShapeDtypeStruct((num_splits * 8, 128), jnp.float32),
        grid_spec=pltpu.PrefetchScalarGridSpec(
            num_scalar_prefetch=0,
            grid=(num_splits, tiles_per_split),
            in_specs=[pl.BlockSpec((tile_b, n_classes), x_index_map)],
            out_specs=pl.BlockSpec((8, 128), lambda s, t: (s, 0)),
            scratch_shapes=[pltpu.VMEM((1, 1), jnp.float32)],
        ),
        compiler_params=pltpu.CompilerParams(
            dimension_semantics=("parallel", "arbitrary")),
    )(x)

    # Each split's partial sits at [s*8, 0]; combine and apply -1/B once.
    per_split = partials.reshape(num_splits, 8, 128)[:, 0, 0]
    return per_split.sum() * (-1.0 / batch)


def _reference(x):
    # Pure-JAX reference mirroring the PyTorch module exactly.
    lp = jax.nn.log_softmax(x, axis=1)
    p = jax.nn.softmax(x, axis=1)
    b = (p * lp).sum(axis=1)
    return -1.0 * b.mean(axis=0)


if __name__ == "__main__":
    key = jax.random.PRNGKey(0)

    # Primary small DANN-style case: (batch, num_classes) = (8, 32).
    x = jax.random.normal(key, (8, 32), dtype=jnp.float32)
    loss = jax.block_until_ready(conditional_entropy_loss(x))
    ref = jax.block_until_ready(_reference(x))
    assert np.allclose(np.asarray(loss), np.asarray(ref), rtol=1e-5, atol=1e-5), (
        f"mismatch: kernel={float(loss)} ref={float(ref)}"
    )

    # Exercise the tiled / masked / dual-split path (partial + clamped tiles):
    # B=40, tile_b=16 -> 3 real tiles, 2 splits x 2 steps, one clamped tile.
    x2 = jax.random.normal(jax.random.PRNGKey(0), (40, 32), dtype=jnp.float32)
    loss2 = jax.block_until_ready(conditional_entropy_loss(x2, tile_b=16))
    ref2 = jax.block_until_ready(_reference(x2))
    assert np.allclose(np.asarray(loss2), np.asarray(ref2), rtol=1e-5, atol=1e-5), (
        f"mismatch (tiled path): kernel={float(loss2)} ref={float(ref2)}"
    )

    print("KERNEL_OK")
</pallas_src>

<mosaic_0001>
module attributes {stable_mosaic.version = 11 : i64} {
  func.func @_cond_entropy_kernel(%arg0: i32, %arg1: i32, %arg2: memref<8x32xf32, #tpu.memory_space<vmem>>, %arg3: memref<8x128xf32, #tpu.memory_space<vmem>>, %arg4: memref<1x1xf32, #tpu.memory_space<vmem>>) attributes {dimension_semantics = [#tpu.dimension_semantics<parallel>, #tpu.dimension_semantics<arbitrary>], iteration_bounds = array<i64: 1, 1>, scalar_prefetch = 0 : i64, scratch_operands = 1 : i64, tpu.core_type = #tpu.core_type<tc>, window_params = [{transform_indices = @transform_0, window_bounds = array<i64: 8, 32>}, {transform_indices = @transform_1, window_bounds = array<i64: 8, 128>}]} {
    %c0_i32 = arith.constant 0 : i32
    %0 = arith.cmpi eq, %arg1, %c0_i32 : i32
    %1 = arith.extui %0 : i1 to i32
    %c0_i32_0 = arith.constant 0 : i32
    %2 = arith.cmpi ne, %1, %c0_i32_0 : i32
    scf.if %2 {
      %cst_13 = arith.constant 0.000000e+00 : f32
      %35 = vector.broadcast %cst_13 : f32 to vector<1x1xf32>
      %c0_14 = arith.constant 0 : index
      %c0_15 = arith.constant 0 : index
      %36 = vector.load %arg4[%c0_14, %c0_15] : memref<1x1xf32, #tpu.memory_space<vmem>>, vector<1x1xf32>
      tpu.vector_store %arg4[%c0_14, %c0_15], %35 {strides = array<i32>} : memref<1x1xf32, #tpu.memory_space<vmem>>, vector<1x1xf32>,
    } else {
    }
    %c0 = arith.constant 0 : index
    %c0_1 = arith.constant 0 : index
    %3 = vector.load %arg2[%c0, %c0_1] : memref<8x32xf32, #tpu.memory_space<vmem>>, vector<8x32xf32>
    %cst = arith.constant dense<0xFF800000> : vector<8xf32>
    %4 = vector.multi_reduction <maximumf>, %3, %cst [1] : vector<8x32xf32> to vector<8xf32>
    %5 = vector.shape_cast %4 : vector<8xf32> to vector<8x1xf32>
    %6 = vector.broadcast %5 : vector<8x1xf32> to vector<8x32xf32>
    %7 = arith.subf %3, %6 : vector<8x32xf32>
    %8 = math.exp %7 : vector<8x32xf32>
    %cst_2 = arith.constant dense<0.000000e+00> : vector<8xf32>
    %9 = vector.multi_reduction <add>, %8, %cst_2 [1] : vector<8x32xf32> to vector<8xf32>
    %10 = vector.shape_cast %9 : vector<8xf32> to vector<8x1xf32>
    %11 = arith.mulf %8, %7 : vector<8x32xf32>
    %cst_3 = arith.constant dense<0.000000e+00> : vector<8xf32>
    %12 = vector.multi_reduction <add>, %11, %cst_3 [1] : vector<8x32xf32> to vector<8xf32>
    %13 = vector.shape_cast %12 : vector<8xf32> to vector<8x1xf32>
    %14 = arith.divf %13, %10 : vector<8x1xf32>
    %15 = math.log %10 : vector<8x1xf32>
    %16 = arith.subf %14, %15 : vector<8x1xf32>
    %c1_i32 = arith.constant 1 : i32
    %17 = arith.muli %arg0, %c1_i32 : i32
    %18 = arith.addi %17, %arg1 : i32
    %c8_i32 = arith.constant 8 : i32
    %19 = arith.muli %18, %c8_i32 : i32
    %20 = tpu.iota {dimensions = array<i32: 0>} : vector<8x1xi32>
    %21 = vector.broadcast %19 : i32 to vector<8x1xi32>
    %22 = arith.addi %21, %20 : vector<8x1xi32>
    %c8_i32_4 = arith.constant 8 : i32
    %23 = vector.broadcast %c8_i32_4 : i32 to vector<8x1xi32>
    %24 = arith.cmpi slt, %22, %23 : vector<8x1xi32>
    %cst_5 = arith.constant 0.000000e+00 : f32
    %25 = vector.broadcast %cst_5 : f32 to vector<8x1xf32>
    %26 = arith.select %24, %16, %25 : vector<8x1xi1>, vector<8x1xf32>
    %c0_6 = arith.constant 0 : index
    %c0_7 = arith.constant 0 : index
    %27 = vector.load %arg4[%c0_6, %c0_7] : memref<1x1xf32, #tpu.memory_space<vmem>>, vector<1x1xf32>
    %cst_8 = arith.constant dense<0.000000e+00> : vector<1xf32>
    %28 = vector.multi_reduction <add>, %26, %cst_8 [0] : vector<8x1xf32> to vector<1xf32>
    %29 = vector.shape_cast %28 : vector<1xf32> to vector<1x1xf32>
    %30 = arith.addf %27, %29 : vector<1x1xf32>
    %c0_9 = arith.constant 0 : index
    %c0_10 = arith.constant 0 : index
    %31 = vector.load %arg4[%c0_9, %c0_10] : memref<1x1xf32, #tpu.memory_space<vmem>>, vector<1x1xf32>
    tpu.vector_store %arg4[%c0_9, %c0_10], %30 {strides = array<i32>} : memref<1x1xf32, #tpu.memory_space<vmem>>, vector<1x1xf32>,
    %c0_i32_11 = arith.constant 0 : i32
    %32 = arith.cmpi eq, %arg1, %c0_i32_11 : i32
    %33 = arith.extui %32 : i1 to i32
    %c0_i32_12 = arith.constant 0 : i32
    %34 = arith.cmpi ne, %33, %c0_i32_12 : i32
    scf.if %34 {
      %c0_13 = arith.constant 0 : index
      %c0_14 = arith.constant 0 : index
      %35 = vector.load %arg4[%c0_13, %c0_14] : memref<1x1xf32, #tpu.memory_space<vmem>>, vector<1x1xf32>
      %36 = vector.shape_cast %35 : vector<1x1xf32> to vector<1x1xf32>
      %37 = vector.broadcast %36 : vector<1x1xf32> to vector<8x128xf32>
      %c0_15 = arith.constant 0 : index
      %c0_16 = arith.constant 0 : index
      %38 = vector.load %arg3[%c0_15, %c0_16] : memref<8x128xf32, #tpu.memory_space<vmem>>, vector<8x128xf32>
      tpu.vector_store %arg3[%c0_15, %c0_16], %37 {strides = array<i32>} : memref<8x128xf32, #tpu.memory_space<vmem>>, vector<8x128xf32>,
    } else {
    }
    return
  }
  func.func @transform_0(%arg0: i32, %arg1: i32) -> (i32, i32) {
    %c1_i32 = arith.constant 1 : i32
    %0 = arith.muli %arg0, %c1_i32 : i32
    %1 = arith.addi %0, %arg1 : i32
    %c0_i32 = arith.constant 0 : i32
    %2 = arith.minsi %1, %c0_i32 : i32
    %c0_i32_0 = arith.constant 0 : i32
    %c0_i32_1 = arith.constant 0 : i32
    return %2, %c0_i32_0 : i32, i32
  }
  func.func @transform_1(%arg0: i32, %arg1: i32) -> (i32, i32) {
    %c0_i32 = arith.constant 0 : i32
    %c0_i32_0 = arith.constant 0 : i32
    return %arg0, %c0_i32 : i32, i32
  }
}

</mosaic_0001>

<llo_original>
// kernel: tpu_custom_call.1
$region0: #{tpu_custom_call.1}
  #allocation0 [shape = 'u32[]', space=smem, size = 0x4, offset = 0x4, fixed_abs, tag = 'smem constant byte address 0x4 - core index']
  #allocation1 [shape = 'u32[144,128]{1,0:T(1,128)}', space=vmem, size = 0x12000, scoped, tag = 'internal scratch']
  #allocation2 [shape = 'f32[1,1]{1,0:T(1,128)}', space=vmem, size = 0x200, scoped, tag = 'scratch operand']
  %s0 = inlined_call_operand.hbm [shape: f32[8,32], index: 0, kind: input, shape index: {}]
  %s1 = inlined_call_operand.hbm [shape: f32[8,128], index: 1, kind: output, shape index: {}]
  %s2 = sld [smem:[#allocation0]]
  $region26: #{tpu_custom_call.1} parent=0
    _
  %s4 = ssub.s32 1, %s2
  %s5 = scalar_select 0, %s4, %s2
  $region1: #{tpu_custom_call.1} parent=0
    #allocation3 [shape = 'u8[4096]{0}', space=vmem, size = 0x1000, scoped, tag = 'input window, operand 0, single buffered']
    #allocation4 [shape = 's32[1]{0}', space=sflag, size = 0x4, scoped, tag = 'scoped memory for tpu_custom_call.1']
    #allocation5 [shape = 's32[1]{0}', space=sflag, size = 0x4, scoped, tag = 'scoped memory for tpu_custom_call.1']
    #allocation6 [shape = 'u8[4096]{0}', space=vmem, size = 0x1000, scoped, tag = 'output window, operand 0, single buffered']
    %6 = vsyncpa [#allocation4], 0
    %7 = vsyncpa [#allocation5], 0
    // Predicated region
    $region2: #{tpu_custom_call.1} parent=1 // pred_check
      _
    $region3: #{tpu_custom_call.1} parent=1 // pred_check_branch
      %9 = sbr.rel (0) target = $region5
    $region4: #{tpu_custom_call.1} parent=1 // pred_region
      %s10 = sadd.s32 0, 0
      %p11 = scmp.lt.s32.totalorder %s10, 0
      %s12 = scalar_select %p11, %s10, 0
      %s14 = ssub.s32 128, 128
      %15 = vsyncadd [#allocation4], %s14
      %s16 = smul.addr %s12, 128
      %s17 = scalar_lea.hbm %s0, %s16
      %s19 = sshll.u32 [#allocation3], 4
      %s20 = int_to_ptr.vmem [resolvable:$true] %s19
      %22 = dma.hbm_to_vmem [thread:$0]  %s17, 128, %s20, [#allocation4]
    $region5: #{tpu_custom_call.1} parent=1 // pred_fallthru
      _
    // Predicated region
    $region6: #{tpu_custom_call.1} parent=1 // pred_check
      _
    $region7: #{tpu_custom_call.1} parent=1 // pred_check_branch
      %24 = sbr.rel (0) target = $region9
    $region8: #{tpu_custom_call.1} parent=1 // pred_region
      %25 = dma.done [#allocation4], 128
    $region9: #{tpu_custom_call.1} parent=1 // pred_fallthru
      _
    %s26 = sadd.s32 0, 0
    %p27 = scmp.lt.s32.totalorder %s26, 0
    %s28 = scalar_select %p27, %s26, 0
    %p29 = scmp.eq.s32.totalorder 0, 0
    // Predicated region
    $region10: #{tpu_custom_call.1} parent=1 // pred_check
      %p30 = pneg %p29
    $region11: #{tpu_custom_call.1} parent=1 // pred_check_branch
      %32 = sbr.rel (%p30) target = $region13
    $region12: #{tpu_custom_call.1} parent=1 // pred_region
      %vm33 = vcmask 0
      %34 = vst.msk [vmem:[#allocation2] sm:$0x1] %vm33, 0.0
    $region13: #{tpu_custom_call.1} parent=1 // pred_fallthru
      _
    %v35 = vld [vmem:[#allocation3] sm:$0xff]
    %vm36 = vcmask 261120
    %v37 = vsel %vm36, %v35, -inf
    %38 = vmax.xlane.f32.xlu0 %v37
    %v39 = vpop.xlane.xlu0 %38
    %v40 = vsub.f32 %v35, %v39
    %v41 = vmul.f32 %v40, 1.442695
    %v42 = vpow.pop %v41
    %v43 = vsel %vm36, %v42, 0.0
    %44 = vadd.xlane.f32.xlu0 %v43
    %v45 = vpop.xlane.xlu0 %44
    %v46 = vmul.f32 %v42, %v40
    %v47 = vsel %vm36, %v46, 0.0
    %48 = vadd.xlane.f32.xlu0 %v47
    %v49 = vpop.xlane.xlu0 %48
    %v50 = vrcp.pop %v45
    %v51 = vmul.f32 %v49, %v50
    %v52 = vlog2.pop %v45
    %v53 = vmul.f32 %v52, 0.6931472
    %v54 = vsub.f32 %v51, %v53
    %s55 = sadd.s32 0, 0
    %s56 = smul.u32 %s55, 8
    %v57 = vlaneseq
    %v58 = vshrl.u32 %v57, 7
    %v59 = vstv %s56
    %v60 = vadd.s32 %v59, %v58
    %vm61 = vcmp.lt.s32.totalorder %v60, 8
    %v62 = vsel %vm61, %v54, 0.0
    %v63 = vld [vmem:[#allocation2] sm:$0x1]
    %v64 = vrot.slane %v62, 4
    %v65 = vadd.f32 %v62, %v64
    %v66 = vrot.slane %v65, 2
    %v67 = vadd.f32 %v65, %v66
    %v68 = vrot.slane %v67, 1
    %v69 = vadd.f32 %v67, %v68
    %v70 = vadd.f32 %v63, %v69
    %vm71 = vcmask 0
    %72 = vst.msk [vmem:[#allocation2] sm:$0x1] %vm71, %v70
    // Predicated region
    $region14: #{tpu_custom_call.1} parent=1 // pred_check
      %p73 = pneg %p29
    $region15: #{tpu_custom_call.1} parent=1 // pred_check_branch
      %75 = sbr.rel (%p73) target = $region17
    $region16: #{tpu_custom_call.1} parent=1 // pred_region
      %v76 = vld [vmem:[#allocation2] sm:$0x1]
      %v78 = vlaneseq
      %v79 = vshrl.u32 %v78, 7
      %v80 = vsub.s32 0, %v79
      %v81 = vrot.slane %v76, %v80
      %82 = vset.pattern.permute.xlu0 0
      %83 = vperm.xlu0 %82, %v81
      %v84 = vpop.permute.xlu0 %83
      %86 = vst [vmem:[#allocation6] sm:$0xff] %v84
    $region17: #{tpu_custom_call.1} parent=1 // pred_fallthru
      _
    // Predicated region
    $region18: #{tpu_custom_call.1} parent=1 // pred_check
      _
    $region19: #{tpu_custom_call.1} parent=1 // pred_check_branch
      %88 = sbr.rel (0) target = $region21
    $region20: #{tpu_custom_call.1} parent=1 // pred_region
      %s90 = ssub.s32 128, 128
      %91 = vsyncadd [#allocation5], %s90
      %s93 = sshll.u32 [#allocation6], 4
      %s94 = int_to_ptr.vmem [resolvable:$true] %s93
      %96 = dma.vmem_to_hbm [thread:$0]  %s94, 128, %s1, [#allocation5]
    $region21: #{tpu_custom_call.1} parent=1 // pred_fallthru
      _
    // Predicated region
    $region22: #{tpu_custom_call.1} parent=1 // pred_check
      _
    $region23: #{tpu_custom_call.1} parent=1 // pred_check_branch
      %98 = sbr.rel (0) target = $region25
    $region24: #{tpu_custom_call.1} parent=1 // pred_region
      %99 = dma.done [#allocation5], 128
    $region25: #{tpu_custom_call.1} parent=1 // pred_fallthru
      _
    %100 = vsyncpa [#allocation4], 1
    %101 = vsyncpa [#allocation5], 1

</llo_original>
